<compile_context>
chip_gen: v7x
topology: tpu7x:2x2x1
jax: 0.10.0
libtpu: 0.0.40
codegen_flags: <defaults>
</compile_context>

<pallas_src>
import functools

import jax
import jax.numpy as jnp
from jax.experimental import pallas as pl
from jax.experimental.pallas import tpu as pltpu

ALPHA = 0.25
GAMMA = 2.0  # statically 2.0 -> squared explicitly in the kernel
EPS = 1e-7

LANES = 128
SUBLANES = 8
ELEMS_PER_SUPER = SUBLANES * LANES          # 1024 elements per super-row
MAX_BLOCK_SUPERS = 512                      # (512, 8, 128) f32 = 2 MiB / input / buffer


def _focal_loss_kernel(pred_ref, tgt_ref, out_ref, *,
                       n_super, blk_super, needs_mask, binary_targets):
    # Block shape: (blk_super, 8, 128) -> purely elementwise VPU/EUP work.
    p = pred_ref[...].astype(jnp.float32)
    t = tgt_ref[...].astype(jnp.float32)

    p = jnp.clip(p, EPS, 1.0 - EPS)

    # FMA-friendly rewrites of the reference algebra (identical math):
    #   p_t     = t*p + (1-t)*(1-p)   = (1-p) + t*(2p - 1)
    #   alpha_t = t*a + (1-t)*(1-a)   = (1-a) + t*(2a - 1)
    p_t = (1.0 - p) + t * (2.0 * p - 1.0)
    alpha_t = (1.0 - ALPHA) + t * (2.0 * ALPHA - 1.0)

    if binary_targets:
        # Exact only for t in {0,1}: ce = -log(p_t). One EUP log instead of two.
        ce = -jnp.log(p_t)
    else:
        ce = -(t * jnp.log(p) + (1.0 - t) * jnp.log(1.0 - p))

    q = 1.0 - p_t
    # gamma == 2.0: explicit square avoids exp(gamma*log(x)) on the single-slot EUP.
    loss = (alpha_t * (q * q)) * ce

    if needs_mask:
        # Ragged last grid block: the out-of-bounds part of the VMEM buffer is
        # undefined (possibly NaN) -> select 0 for super-rows >= n_super.
        sup = (jax.lax.broadcasted_iota(jnp.int32, loss.shape, 0)
               + pl.program_id(0) * blk_super)
        loss = jnp.where(sup < n_super, loss, 0.0)

    # Per-(sublane, lane) partial sum over the leading axis: VPU adds only.
    # The single global reduce + divide happens once, in the wrapper.
    out_ref[...] = jnp.sum(loss, axis=0, keepdims=True)


def _choose_blocking(n_super):
    """Balanced blocks, capped at MAX_BLOCK_SUPERS, >=2 blocks when possible
    (so both TensorCores get work on v7x)."""
    num_blocks = max(min(n_super, 2), pl.cdiv(n_super, MAX_BLOCK_SUPERS))
    blk_super = pl.cdiv(n_super, num_blocks)
    num_blocks = pl.cdiv(n_super, blk_super)
    return blk_super, num_blocks


def focal_loss(pred, target, *, binary_targets=False):
    """Focal loss forward (mean reduction), matching the PyTorch module.

    pred/target may be any float (pred) / float-or-int (target) dtype; they are
    cast to f32 inside the kernel, so bf16 pred + int8 target halve HBM traffic.
    """
    assert pred.shape == target.shape
    total = pred.size

    flat_p = pred.reshape(-1)
    flat_t = target.reshape(-1)

    # Pad only to the next multiple of one super-row (<=1023 elements) with
    # pred=1 / target=1: their clamped focal loss is ~2.5e-22 each (negligible),
    # and we divide by the TRUE element count below.
    pad = (-total) % ELEMS_PER_SUPER
    if pad:
        flat_p = jnp.pad(flat_p, (0, pad), constant_values=1)
        flat_t = jnp.pad(flat_t, (0, pad), constant_values=1)
    n_super = (total + pad) // ELEMS_PER_SUPER

    blk_super, num_blocks = _choose_blocking(n_super)
    needs_mask = (num_blocks * blk_super) != n_super

    p3 = flat_p.reshape(n_super, SUBLANES, LANES)
    t3 = flat_t.reshape(n_super, SUBLANES, LANES)

    kernel = functools.partial(
        _focal_loss_kernel,
        n_super=n_super,
        blk_super=blk_super,
        needs_mask=needs_mask,
        binary_targets=binary_targets,
    )

    in_bytes = total * (jnp.dtype(pred.dtype).itemsize
                        + jnp.dtype(target.dtype).itemsize)
    out_bytes = num_blocks * SUBLANES * LANES * 4
    cost = pl.CostEstimate(
        flops=16 * total,
        transcendentals=(1 if binary_targets else 2) * total,
        bytes_accessed=in_bytes + out_bytes,
    )

    partials = pl.pallas_call(
        kernel,
        out_shape=jax.ShapeDtypeStruct((num_blocks, SUBLANES, LANES), jnp.float32),
        grid_spec=pltpu.PrefetchScalarGridSpec(
            num_scalar_prefetch=0,
            grid=(num_blocks,),
            in_specs=[
                pl.BlockSpec((blk_super, SUBLANES, LANES), lambda i: (i, 0, 0)),
                pl.BlockSpec((blk_super, SUBLANES, LANES), lambda i: (i, 0, 0)),
            ],
            out_specs=pl.BlockSpec((1, SUBLANES, LANES), lambda i: (i, 0, 0)),
        ),
        compiler_params=pltpu.CompilerParams(
            # Blocks are independent partial sums -> megacore-shardable on v7x.
            dimension_semantics=("parallel",),
            # Headroom for 2 inputs x 2 buffers x 2 MiB + intermediates.
            vmem_limit_bytes=32 * 1024 * 1024,
        ),
        cost_estimate=cost,
    )(p3, t3)

    # Single global sum + mean in f32 (divide by the true element count).
    return jnp.sum(partials) / jnp.float32(total)


def focal_loss_ref(pred, target):
    """Pure-JAX reference mirroring the PyTorch forward exactly."""
    p = jnp.clip(pred.astype(jnp.float32), EPS, 1.0 - EPS)
    t = target.astype(jnp.float32)
    ce = -t * jnp.log(p) - (1.0 - t) * jnp.log(1.0 - p)
    p_t = t * p + (1.0 - t) * (1.0 - p)
    alpha_t = t * ALPHA + (1.0 - t) * (1.0 - ALPHA)
    weight = alpha_t * (1.0 - p_t) ** GAMMA
    return jnp.mean(weight * ce)


if __name__ == "__main__":
    key = jax.random.PRNGKey(0)

    # Small NCHW-shaped inputs: pred are probabilities, target are {0,1} labels.
    # Shapes chosen to exercise: exact fit, ragged grid (odd super count), and
    # the <=1023-element pad path.
    shapes = [(2, 4, 16, 16),   # 2048 elems: 2 super-rows, 2 blocks (both TCs)
              (2, 3, 16, 32),   # 3072 elems: 3 super-rows, ragged last block (mask)
              (3, 5, 7, 11)]    # 1155 elems: needs 893-element pad
    for shape in shapes:
        key, kp, kt = jax.random.split(key, 3)
        pred = jax.random.uniform(kp, shape, dtype=jnp.float32)
        target = (jax.random.uniform(kt, shape) > 0.8).astype(jnp.float32)

        loss = jax.block_until_ready(focal_loss(pred, target))
        ref = focal_loss_ref(pred, target)
        assert jnp.allclose(loss, ref, rtol=1e-5, atol=1e-6), (shape, loss, ref)

        # Single-log binary-target fast path (exact for {0,1} labels).
        loss_bin = jax.block_until_ready(focal_loss(pred, target, binary_targets=True))
        assert jnp.allclose(loss_bin, ref, rtol=1e-5, atol=1e-6), (shape, loss_bin, ref)

    print("KERNEL_OK")
</pallas_src>

<mosaic_0001>
module attributes {stable_mosaic.version = 11 : i64} {
  func.func @_focal_loss_kernel(%arg0: i32, %arg1: memref<1x8x128xf32, #tpu.memory_space<vmem>>, %arg2: memref<1x8x128xf32, #tpu.memory_space<vmem>>, %arg3: memref<1x8x128xf32, #tpu.memory_space<vmem>>) attributes {dimension_semantics = [#tpu.dimension_semantics<parallel>], iteration_bounds = array<i64: 2>, scalar_prefetch = 0 : i64, scratch_operands = 0 : i64, tpu.core_type = #tpu.core_type<tc>, window_params = [{transform_indices = @transform_0, window_bounds = array<i64: 1, 8, 128>}, {transform_indices = @transform_1, window_bounds = array<i64: 1, 8, 128>}, {transform_indices = @transform_2, window_bounds = array<i64: 1, 8, 128>}]} {
    %c0 = arith.constant 0 : index
    %c0_0 = arith.constant 0 : index
    %c0_1 = arith.constant 0 : index
    %0 = vector.load %arg1[%c0, %c0_0, %c0_1] : memref<1x8x128xf32, #tpu.memory_space<vmem>>, vector<1x8x128xf32>
    %c0_2 = arith.constant 0 : index
    %c0_3 = arith.constant 0 : index
    %c0_4 = arith.constant 0 : index
    %1 = vector.load %arg2[%c0_2, %c0_3, %c0_4] : memref<1x8x128xf32, #tpu.memory_space<vmem>>, vector<1x8x128xf32>
    %cst = arith.constant 1.000000e-07 : f32
    %cst_5 = arith.constant 0.99999988 : f32
    %2 = vector.broadcast %cst : f32 to vector<1x8x128xf32>
    %3 = arith.maximumf %2, %0 : vector<1x8x128xf32>
    %4 = vector.broadcast %cst_5 : f32 to vector<1x8x128xf32>
    %5 = arith.minimumf %4, %3 : vector<1x8x128xf32>
    %cst_6 = arith.constant 1.000000e+00 : f32
    %6 = vector.broadcast %cst_6 : f32 to vector<1x8x128xf32>
    %7 = arith.subf %6, %5 : vector<1x8x128xf32>
    %cst_7 = arith.constant 2.000000e+00 : f32
    %8 = vector.broadcast %cst_7 : f32 to vector<1x8x128xf32>
    %9 = arith.mulf %8, %5 : vector<1x8x128xf32>
    %cst_8 = arith.constant 1.000000e+00 : f32
    %10 = vector.broadcast %cst_8 : f32 to vector<1x8x128xf32>
    %11 = arith.subf %9, %10 : vector<1x8x128xf32>
    %12 = arith.mulf %1, %11 : vector<1x8x128xf32>
    %13 = arith.addf %7, %12 : vector<1x8x128xf32>
    %cst_9 = arith.constant -5.000000e-01 : f32
    %14 = vector.broadcast %cst_9 : f32 to vector<1x8x128xf32>
    %15 = arith.mulf %1, %14 : vector<1x8x128xf32>
    %cst_10 = arith.constant 7.500000e-01 : f32
    %16 = vector.broadcast %cst_10 : f32 to vector<1x8x128xf32>
    %17 = arith.addf %16, %15 : vector<1x8x128xf32>
    %18 = math.log %5 : vector<1x8x128xf32>
    %19 = arith.mulf %1, %18 : vector<1x8x128xf32>
    %cst_11 = arith.constant 1.000000e+00 : f32
    %20 = vector.broadcast %cst_11 : f32 to vector<1x8x128xf32>
    %21 = arith.subf %20, %1 : vector<1x8x128xf32>
    %cst_12 = arith.constant 1.000000e+00 : f32
    %22 = vector.broadcast %cst_12 : f32 to vector<1x8x128xf32>
    %23 = arith.subf %22, %5 : vector<1x8x128xf32>
    %24 = math.log %23 : vector<1x8x128xf32>
    %25 = arith.mulf %21, %24 : vector<1x8x128xf32>
    %26 = arith.addf %19, %25 : vector<1x8x128xf32>
    %cst_13 = arith.constant 0.000000e+00 : f32
    %27 = vector.broadcast %cst_13 : f32 to vector<1x8x128xf32>
    %28 = arith.subf %27, %26 : vector<1x8x128xf32>
    %cst_14 = arith.constant 1.000000e+00 : f32
    %29 = vector.broadcast %cst_14 : f32 to vector<1x8x128xf32>
    %30 = arith.subf %29, %13 : vector<1x8x128xf32>
    %31 = arith.mulf %30, %30 : vector<1x8x128xf32>
    %32 = arith.mulf %17, %31 : vector<1x8x128xf32>
    %33 = arith.mulf %32, %28 : vector<1x8x128xf32>
    %cst_15 = arith.constant dense<0.000000e+00> : vector<8x128xf32>
    %34 = vector.multi_reduction <add>, %33, %cst_15 [0] : vector<1x8x128xf32> to vector<8x128xf32>
    %35 = vector.shape_cast %34 : vector<8x128xf32> to vector<1x8x128xf32>
    %c0_16 = arith.constant 0 : index
    %c0_17 = arith.constant 0 : index
    %c0_18 = arith.constant 0 : index
    %36 = vector.load %arg3[%c0_16, %c0_17, %c0_18] : memref<1x8x128xf32, #tpu.memory_space<vmem>>, vector<1x8x128xf32>
    tpu.vector_store %arg3[%c0_16, %c0_17, %c0_18], %35 {strides = array<i32>} : memref<1x8x128xf32, #tpu.memory_space<vmem>>, vector<1x8x128xf32>,
    return
  }
  func.func @transform_0(%arg0: i32) -> (i32, i32, i32) {
    %c0_i32 = arith.constant 0 : i32
    %c0_i32_0 = arith.constant 0 : i32
    %c0_i32_1 = arith.constant 0 : i32
    return %arg0, %c0_i32, %c0_i32_0 : i32, i32, i32
  }
  func.func @transform_1(%arg0: i32) -> (i32, i32, i32) {
    %c0_i32 = arith.constant 0 : i32
    %c0_i32_0 = arith.constant 0 : i32
    %c0_i32_1 = arith.constant 0 : i32
    return %arg0, %c0_i32, %c0_i32_0 : i32, i32, i32
  }
  func.func @transform_2(%arg0: i32) -> (i32, i32, i32) {
    %c0_i32 = arith.constant 0 : i32
    %c0_i32_0 = arith.constant 0 : i32
    %c0_i32_1 = arith.constant 0 : i32
    return %arg0, %c0_i32, %c0_i32_0 : i32, i32, i32
  }
}

</mosaic_0001>

<llo_original>
// kernel: tpu_custom_call.1
$region0: #{tpu_custom_call.1}
  #allocation0 [shape = 'u32[]', space=smem, size = 0x4, offset = 0x4, fixed_abs, tag = 'smem constant byte address 0x4 - core index']
  #allocation1 [shape = 'u32[144,128]{1,0:T(1,128)}', space=vmem, size = 0x12000, scoped, tag = 'internal scratch']
  %s0 = inlined_call_operand.hbm [shape: f32[2,8,128], index: 0, kind: input, shape index: {}]
  %s1 = inlined_call_operand.hbm [shape: f32[2,8,128], index: 1, kind: input, shape index: {}]
  %s2 = inlined_call_operand.hbm [shape: f32[2,8,128], index: 2, kind: output, shape index: {}]
  %s3 = sld [smem:[#allocation0]]
  $region49: #{tpu_custom_call.1} parent=0
    _
  %s5 = ssub.s32 1, %s3
  %s6 = scalar_select 0, %s5, %s3
  $region1: #{tpu_custom_call.1} parent=0
    #allocation2 [shape = 'u8[8192]{0}', space=vmem, size = 0x2000, scoped, tag = 'input window, operand 0']
    #allocation3 [shape = 's32[2]{0}', space=sflag, size = 0x8, scoped, tag = 'scoped memory for tpu_custom_call.1']
    #allocation4 [shape = 's32[2]{0}', space=sflag, size = 0x8, scoped, tag = 'scoped memory for tpu_custom_call.1']
    #allocation5 [shape = 'u8[8192]{0}', space=vmem, size = 0x2000, scoped, tag = 'input window, operand 1']
    #allocation6 [shape = 's32[2]{0}', space=sflag, size = 0x8, scoped, tag = 'scoped memory for tpu_custom_call.1']
    #allocation7 [shape = 'u8[8192]{0}', space=vmem, size = 0x2000, scoped, tag = 'output window, operand 0']
    %7 = vsyncpa [#allocation3], 0
    %s8 = scalar_lea.sflag [#allocation3], 1
    %9 = vsyncpa %s8, 0
    %10 = vsyncpa [#allocation6], 0
    %s11 = scalar_lea.sflag [#allocation6], 1
    %12 = vsyncpa %s11, 0
    %13 = vsyncpa [#allocation4], 0
    %s14 = scalar_lea.sflag [#allocation4], 1
    %15 = vsyncpa %s14, 0
    loop: start=0, step=1, limit=4
    $region2: #{tpu_custom_call.1} parent=1 // loop_pre_header
      _
    $region3: #{tpu_custom_call.1} parent=1 // loop_header
      %s17 = sphi 0, %s21
      %p18 = scmp.ge.s32.totalorder %s17, 4
      %s27 = sphi 0, %s29
      %s30 = sphi 0, %s27
      %s31 = sphi 0, %s30
      %s47 = sphi 0, %s31
      %s53 = sphi 0, %s55
      %s56 = sphi 0, %s53
      %s57 = sphi 0, %s56
      %s73 = sphi 0, %s57
      %s79 = sphi 0, %s81
      %s82 = sphi 0, %s79
      %s83 = sphi 0, %s82
      %s99 = sphi 0, %s83
    $region4: #{tpu_custom_call.1} parent=1 // loop_header_branch
      %20 = sbr.rel (%p18) target = $region8
    $region5: #{tpu_custom_call.1} parent=1 // loop_body
      %s22 = ssub.s32 %s17, 1
      %s23 = ssub.s32 %s17, 2
      %s24 = sadd.s32 %s17, 1
      %s25 = ssub.s32 %s17, %s24
      %p26 = scmp.eq.s32.totalorder %s25, 0
      %s28 = sadd.s32 %s27, 1
      %s29 = scalar_select %p26, %s27, %s28
      %p32 = pneg %p26
      %p33 = scmp.eq.s32.totalorder %s17, 1
      %p34 = por %p32, %p33
      %p35 = scmp.ne.s32.totalorder %s27, %s30
      %p36 = scmp.eq.s32.totalorder %s17, 0
      %p37 = por %p35, %p36
      %p38 = scmp.ne.s32.totalorder %s27, %s30
      %p39 = scmp.eq.s32.totalorder %s22, 1
      %p40 = por %p38, %p39
      %p41 = scmp.ne.s32.totalorder %s30, %s31
      %p42 = scmp.eq.s32.totalorder %s22, 0
      %p43 = por %p41, %p42
      %p44 = scmp.ne.s32.totalorder %s30, %s31
      %p45 = scmp.eq.s32.totalorder %s23, 1
      %p46 = por %p44, %p45
      %p48 = scmp.ne.s32.totalorder %s31, %s47
      %p49 = scmp.eq.s32.totalorder %s23, 0
      %p50 = por %p48, %p49
      %s51 = ssub.s32 %s17, %s24
      %p52 = scmp.eq.s32.totalorder %s51, 0
      %s54 = sadd.s32 %s53, 1
      %s55 = scalar_select %p52, %s53, %s54
      %p58 = pneg %p52
      %p59 = scmp.eq.s32.totalorder %s17, 1
      %p60 = por %p58, %p59
      %p61 = scmp.ne.s32.totalorder %s53, %s56
      %p62 = scmp.eq.s32.totalorder %s17, 0
      %p63 = por %p61, %p62
      %p64 = scmp.ne.s32.totalorder %s53, %s56
      %p65 = scmp.eq.s32.totalorder %s22, 1
      %p66 = por %p64, %p65
      %p67 = scmp.ne.s32.totalorder %s56, %s57
      %p68 = scmp.eq.s32.totalorder %s22, 0
      %p69 = por %p67, %p68
      %p70 = scmp.ne.s32.totalorder %s56, %s57
      %p71 = scmp.eq.s32.totalorder %s23, 1
      %p72 = por %p70, %p71
      %p74 = scmp.ne.s32.totalorder %s57, %s73
      %p75 = scmp.eq.s32.totalorder %s23, 0
      %p76 = por %p74, %p75
      %s77 = ssub.s32 %s17, %s24
      %p78 = scmp.eq.s32.totalorder %s77, 0
      %s80 = sadd.s32 %s79, 1
      %s81 = scalar_select %p78, %s79, %s80
      %p84 = pneg %p78
      %p85 = scmp.eq.s32.totalorder %s17, 1
      %p86 = por %p84, %p85
      %p87 = scmp.ne.s32.totalorder %s79, %s82
      %p88 = scmp.eq.s32.totalorder %s17, 0
      %p89 = por %p87, %p88
      %p90 = scmp.ne.s32.totalorder %s79, %s82
      %p91 = scmp.eq.s32.totalorder %s22, 1
      %p92 = por %p90, %p91
      %p93 = scmp.ne.s32.totalorder %s82, %s83
      %p94 = scmp.eq.s32.totalorder %s22, 0
      %p95 = por %p93, %p94
      %p96 = scmp.ne.s32.totalorder %s82, %s83
      %p97 = scmp.eq.s32.totalorder %s23, 1
      %p98 = por %p96, %p97
      %p100 = scmp.ne.s32.totalorder %s83, %s99
      %p101 = scmp.eq.s32.totalorder %s23, 0
      %p102 = por %p100, %p101
      %p103 = scmp.le.s32.totalorder 1, %s17
      %p104 = scmp.lt.s32.totalorder %s17, 3
      %p105 = pnand %p103, %p104
      %p106 = pneg %p105
      // Predicated region
      $region9: #{tpu_custom_call.1} parent=5 // pred_check
        _
      $region10: #{tpu_custom_call.1} parent=5 // pred_check_branch
        %108 = sbr.rel (%p105) target = $region12
      $region11: #{tpu_custom_call.1} parent=5 // pred_region
        %s109 = ssub.s32 %s17, 1
      $region12: #{tpu_custom_call.1} parent=5 // pred_fallthru
        _
      %p110 = scmp.lt.s32.totalorder %s17, 2
      // Predicated region
      $region13: #{tpu_custom_call.1} parent=5 // pred_check
        %p111 = pneg %p110
      $region14: #{tpu_custom_call.1} parent=5 // pred_check_branch
        %113 = sbr.rel (%p111) target = $region16
      $region15: #{tpu_custom_call.1} parent=5 // pred_region
        // Predicated region
        $region17: #{tpu_custom_call.1} parent=15 // pred_check
          %p114 = pneg %p37
        $region18: #{tpu_custom_call.1} parent=15 // pred_check_branch
          %116 = sbr.rel (%p114) target = $region20
        $region19: #{tpu_custom_call.1} parent=15 // pred_region
          %s117 = sand.u32 %s27, 1
          %s118 = scalar_lea.sflag [#allocation3], %s117
          %s119 = sand.u32 %s27, 1
          %s120 = smul.addr %s119, 8
          %s121 = scalar_lea.vmem [#allocation2], %s120
          %s123 = ssub.s32 128, 128
          %124 = vsyncadd %s118, %s123
          %s125 = smul.addr %s17, 128
          %s126 = scalar_lea.hbm %s0, %s125
          %s128 = sshll.u32 %s121, 4
          %s129 = int_to_ptr.vmem [resolvable:$true] %s128
          %131 = dma.hbm_to_vmem [thread:$0]  %s126, 128, %s129, %s118
        $region20: #{tpu_custom_call.1} parent=15 // pred_fallthru
          _
        // Predicated region
        $region21: #{tpu_custom_call.1} parent=15 // pred_check
          %p132 = pneg %p63
        $region22: #{tpu_custom_call.1} parent=15 // pred_check_branch
          %134 = sbr.rel (%p132) target = $region24
        $region23: #{tpu_custom_call.1} parent=15 // pred_region
          %s135 = sand.u32 %s53, 1
          %s136 = scalar_lea.sflag [#allocation6], %s135
          %s137 = sand.u32 %s53, 1
          %s138 = smul.addr %s137, 8
          %s139 = scalar_lea.vmem [#allocation5], %s138
          %s141 = ssub.s32 128, 128
          %142 = vsyncadd %s136, %s141
          %s143 = smul.addr %s17, 128
          %s144 = scalar_lea.hbm %s1, %s143
          %s146 = sshll.u32 %s139, 4
          %s147 = int_to_ptr.vmem [resolvable:$true] %s146
          %149 = dma.hbm_to_vmem [thread:$0]  %s144, 128, %s147, %s136
        $region24: #{tpu_custom_call.1} parent=15 // pred_fallthru
          _
      $region16: #{tpu_custom_call.1} parent=5 // pred_fallthru
        _
      %p150 = scmp.le.s32.totalorder 1, %s17
      %p151 = scmp.lt.s32.totalorder %s17, 3
      %p152 = pnand %p150, %p151
      %p153 = pneg %p152
      // Predicated region
      $region25: #{tpu_custom_call.1} parent=5 // pred_check
        _
      $region26: #{tpu_custom_call.1} parent=5 // pred_check_branch
        %155 = sbr.rel (%p152) target = $region28
      $region27: #{tpu_custom_call.1} parent=5 // pred_region
        %s156 = ssub.s32 %s17, 1
        %s157 = sand.u32 %s30, 1
        %s158 = scalar_lea.sflag [#allocation3], %s157
        %s159 = sand.u32 %s30, 1
        %s160 = smul.addr %s159, 8
        %s161 = scalar_lea.vmem [#allocation2], %s160
        // Predicated region
        $region29: #{tpu_custom_call.1} parent=27 // pred_check
          %p162 = pneg %p43
        $region30: #{tpu_custom_call.1} parent=27 // pred_check_branch
          %164 = sbr.rel (%p162) target = $region32
        $region31: #{tpu_custom_call.1} parent=27 // pred_region
          %165 = dma.done %s158, 128
        $region32: #{tpu_custom_call.1} parent=27 // pred_fallthru
          _
        %s166 = sand.u32 %s56, 1
        %s167 = scalar_lea.sflag [#allocation6], %s166
        %s168 = sand.u32 %s56, 1
        %s169 = smul.addr %s168, 8
        %s170 = scalar_lea.vmem [#allocation5], %s169
        // Predicated region
        $region33: #{tpu_custom_call.1} parent=27 // pred_check
          %p171 = pneg %p69
        $region34: #{tpu_custom_call.1} parent=27 // pred_check_branch
          %173 = sbr.rel (%p171) target = $region36
        $region35: #{tpu_custom_call.1} parent=27 // pred_region
          %174 = dma.done %s167, 128
        $region36: #{tpu_custom_call.1} parent=27 // pred_fallthru
          _
        %s175 = sand.u32 %s30, 1
        %s176 = scalar_lea.sflag [#allocation3], %s175
        %s177 = sand.u32 %s30, 1
        %s178 = smul.addr %s177, 8
        %s179 = scalar_lea.vmem [#allocation2], %s178
        %p180 = pneg %p43
        %p181 = pneg %p40
        %s182 = sand.u32 %s56, 1
        %s183 = scalar_lea.sflag [#allocation6], %s182
        %s184 = sand.u32 %s56, 1
        %s185 = smul.addr %s184, 8
        %s186 = scalar_lea.vmem [#allocation5], %s185
        %p187 = pneg %p69
        %p188 = pneg %p66
        %p189 = pneg %p95
        %p190 = pneg %p92
        %s191 = sand.u32 %s82, 1
        %s192 = scalar_lea.sflag [#allocation4], %s191
        %s193 = sand.u32 %s82, 1
        %s194 = smul.addr %s193, 8
        %s195 = scalar_lea.vmem [#allocation7], %s194
        %v196 = vld [vmem:[%s161] sm:$0xff]
        %v197 = vld [vmem:[%s170] sm:$0xff]
        %v198 = vmax.f32 %v196, 1e-07
        %v199 = vmin.f32 %v198, 0.9999999
        %v200 = vsub.f32 1.0, %v199
        %v201 = vmul.f32 %v199, 2.0
        %v202 = vsub.f32 %v201, 1.0
        %v203 = vmul.f32 %v197, %v202
        %v204 = vadd.f32 %v200, %v203
        %v205 = vmul.f32 %v197, -0.5
        %v206 = vadd.f32 %v205, 0.75
        %v207 = vlog2.pop %v199
        %v208 = vmul.f32 %v207, 0.6931472
        %v209 = vmul.f32 %v197, %v208
        %v210 = vsub.f32 1.0, %v197
        %v211 = vlog2.pop %v200
        %v212 = vmul.f32 %v211, 0.6931472
        %v213 = vmul.f32 %v210, %v212
        %v214 = vadd.f32 %v209, %v213
        %v215 = vsub.f32 0.0, %v214
        %v216 = vsub.f32 1.0, %v204
        %v217 = vmul.f32 %v216, %v216
        %v218 = vmul.f32 %v206, %v217
        %v219 = vmul.f32 %v218, %v215
        %v220 = vadd.f32 %v219, 0.0
        %221 = vst [vmem:[%s195] sm:$0xff] %v220
        %s222 = sand.u32 %s82, 1
        %s223 = scalar_lea.sflag [#allocation4], %s222
        %s224 = sand.u32 %s82, 1
        %s225 = smul.addr %s224, 8
        %s226 = scalar_lea.vmem [#allocation7], %s225
        // Predicated region
        $region37: #{tpu_custom_call.1} parent=27 // pred_check
          %p227 = pneg %p92
        $region38: #{tpu_custom_call.1} parent=27 // pred_check_branch
          %229 = sbr.rel (%p227) target = $region40
        $region39: #{tpu_custom_call.1} parent=27 // pred_region
          %s231 = ssub.s32 128, 128
          %232 = vsyncadd %s223, %s231
          %s233 = smul.addr %s22, 128
          %s234 = scalar_lea.hbm %s2, %s233
          %s236 = sshll.u32 %s226, 4
          %s237 = int_to_ptr.vmem [resolvable:$true] %s236
          %239 = dma.vmem_to_hbm [thread:$0]  %s237, 128, %s234, %s223
        $region40: #{tpu_custom_call.1} parent=27 // pred_fallthru
          _
      $region28: #{tpu_custom_call.1} parent=5 // pred_fallthru
        _
      %p240 = scmp.le.s32.totalorder 2, %s17
      // Predicated region
      $region41: #{tpu_custom_call.1} parent=5 // pred_check
        %p241 = pneg %p240
      $region42: #{tpu_custom_call.1} parent=5 // pred_check_branch
        %243 = sbr.rel (%p241) target = $region44
      $region43: #{tpu_custom_call.1} parent=5 // pred_region
        %s244 = ssub.s32 %s17, 2
        // Predicated region
        $region45: #{tpu_custom_call.1} parent=43 // pred_check
          %p245 = pneg %p98
        $region46: #{tpu_custom_call.1} parent=43 // pred_check_branch
          %247 = sbr.rel (%p245) target = $region48
        $region47: #{tpu_custom_call.1} parent=43 // pred_region
          %s248 = sand.u32 %s83, 1
          %s249 = scalar_lea.sflag [#allocation4], %s248
          %s250 = sand.u32 %s83, 1
          %s251 = smul.addr %s250, 8
          %s252 = scalar_lea.vmem [#allocation7], %s251
          %253 = dma.done %s249, 128
        $region48: #{tpu_custom_call.1} parent=43 // pred_fallthru
          _
      $region44: #{tpu_custom_call.1} parent=5 // pred_fallthru
        _
    $region6: #{tpu_custom_call.1} parent=1 // loop_footer
      %s21 = sadd.s32 1, %s17
    $region7: #{tpu_custom_call.1} parent=1 // loop_footer_branch
      %16 = sbr.rel target = $region3
    $region8: #{tpu_custom_call.1} parent=1 // loop_exit
      _
    %254 = vsyncpa [#allocation3], 1
    %s255 = scalar_lea.sflag [#allocation3], 1
    %256 = vsyncpa %s255, 1
    %257 = vsyncpa [#allocation6], 1
    %s258 = scalar_lea.sflag [#allocation6], 1
    %259 = vsyncpa %s258, 1
    %260 = vsyncpa [#allocation4], 1
    %s261 = scalar_lea.sflag [#allocation4], 1
    %262 = vsyncpa %s261, 1

</llo_original>
